<compile_context>
chip_gen: v6e
topology: v6e:2x2x1
jax: 0.10.0
libtpu: 0.0.40
codegen_flags: <defaults>
</compile_context>

<pallas_src>
import functools

import jax
import jax.numpy as jnp
from jax.experimental import pallas as pl
from jax.experimental.pallas import tpu as pltpu

_SMOOTH = 1e-5
_LANES = 128
_SUBLANES = 8


def _dice_partial_kernel(x_ref, t_ref, oi_ref, oy_ref, oz_ref,
                         acc_i, acc_y, acc_z, *,
                         softmax, needs_mask, n_valid, ts):
    """One (C, ts, 128) spatial block of one batch item.

    Accumulates sum(x*t), sum(t*t), sum(x*x) per class into (C, <=8, 128)
    scratch; writes the partials to the outputs on the last spatial chunk.
    """
    j = pl.program_id(1)

    @pl.when(j == 0)
    def _init():
        acc_i[...] = jnp.zeros_like(acc_i)
        acc_y[...] = jnp.zeros_like(acc_y)
        acc_z[...] = jnp.zeros_like(acc_z)

    x = x_ref[...].astype(jnp.float32)   # (C, ts, 128): spatial on (sublane, lane)
    t = t_ref[...].astype(jnp.float32)

    valid = None
    if needs_mask:
        # Ragged tail: positions >= n_valid are zero-padded lanes or OOB
        # garbage from the partial last block; zero them before any use.
        sub = jax.lax.broadcasted_iota(jnp.int32, (1, ts, _LANES), 1)
        lane = jax.lax.broadcasted_iota(jnp.int32, (1, ts, _LANES), 2)
        valid = (j * ts + sub) * _LANES + lane < n_valid
        x = jnp.where(valid, x, 0.0)
        t = jnp.where(valid, t, 0.0)

    if softmax:
        # Channel softmax over the leading (non-layout) class axis: pure
        # elementwise vmax/vadd chains + one exp; single reciprocal row
        # (divides reduced by a factor of C vs dividing every element).
        m = jnp.max(x, axis=0, keepdims=True)          # (1, ts, 128)
        e = jnp.exp(x - m)
        den = jnp.sum(e, axis=0, keepdims=True)        # (1, ts, 128)
        x = e * (1.0 / den)
        if needs_mask:
            # masked columns would otherwise be 1/C and pollute sum(x*x)
            x = jnp.where(valid, x, 0.0)

    def _accumulate(acc_ref, a, b):
        # Fold the (C, ts, 128) product into the small accumulator with
        # vreg-aligned 8-row slab adds: never materialises the full product
        # and keeps accumulator ld/st traffic tiny.
        r = acc_ref[...]
        if ts <= _SUBLANES:
            r = r + a * b
        else:  # ts is a multiple of 8 by construction
            for k in range(ts // _SUBLANES):
                s = slice(k * _SUBLANES, (k + 1) * _SUBLANES)
                r = r + a[:, s, :] * b[:, s, :]
        acc_ref[...] = r

    _accumulate(acc_i, x, t)
    _accumulate(acc_y, t, t)
    _accumulate(acc_z, x, x)

    @pl.when(j == pl.num_programs(1) - 1)
    def _finalize():
        # Full lane-dense block writes, once per batch item; the cross-lane
        # reduction happens in the JAX epilogue.
        oi_ref[...] = acc_i[...]
        oy_ref[...] = acc_y[...]
        oz_ref[...] = acc_z[...]


def dice_loss(inputs, target, n_classes, weight=None, softmax=False):
    """Pallas equivalent of DiceLoss.forward.  inputs/target: (B, C, *spatial)."""
    assert inputs.shape == target.shape, "predict & target shape do not match"
    B, C = inputs.shape[0], inputs.shape[1]
    assert C == n_classes
    n_sp = 1
    for d in inputs.shape[2:]:
        n_sp *= int(d)

    if weight is None:
        weight = jnp.ones((n_classes,), jnp.float32)
    else:
        weight = jnp.asarray(weight, jnp.float32)

    # Free views (no data movement): (B, C, *spatial) -> (B, C, n_sp)
    x = inputs.reshape(B, C, n_sp)
    t = target.reshape(B, C, n_sp)

    G = pl.cdiv(n_sp, _LANES)
    lane_pad = G * _LANES - n_sp
    if lane_pad:
        # Only spatial sizes that are not a multiple of 128 pay this copy;
        # the zero tail is masked in-kernel (needed for the softmax path).
        x = jnp.pad(x, ((0, 0), (0, 0), (0, lane_pad)))
        t = jnp.pad(t, ((0, 0), (0, 0), (0, lane_pad)))
    x = x.reshape(B, C, G, _LANES)   # spatial -> (sublane groups, lanes)
    t = t.reshape(B, C, G, _LANES)

    # ---- tile sizing (exact: no sublane-padding waste with this layout) ----
    # Per 128-lane group-row: 2x double-buffered input tiles + ~4 f32 temps.
    in_bytes = inputs.dtype.itemsize + target.dtype.itemsize
    per_group = C * _LANES * (2 * in_bytes + 4 * 4)
    budget = 24 * 1024 * 1024            # conservative across v5e/v6e/v7x
    max_ts = max(_SUBLANES,
                 min(2048, (budget // per_group) // _SUBLANES * _SUBLANES))

    if G <= _SUBLANES:
        ts = G                            # single full-extent block (1..8 rows)
    elif G % _SUBLANES == 0 and G <= max_ts:
        ts = G                            # whole image in one block
    else:
        limit = min(max_ts, (G // _SUBLANES) * _SUBLANES)
        ts = limit
        # Prefer a tile that divides G exactly: the tail mask then vanishes.
        for cand in range(limit, max(limit // 2, _SUBLANES) - 1, -_SUBLANES):
            if G % cand == 0:
                ts = cand
                break

    n_chunks = pl.cdiv(G, ts)
    needs_mask = (n_chunks * ts * _LANES != n_sp)
    acc_rows = min(ts, _SUBLANES)

    kernel = functools.partial(
        _dice_partial_kernel, softmax=softmax, needs_mask=needs_mask,
        n_valid=n_sp, ts=ts)

    part_shape = jax.ShapeDtypeStruct((B, C, acc_rows, _LANES), jnp.float32)
    part_spec = pl.BlockSpec((pl.Squeezed(), C, acc_rows, _LANES),
                             lambda b, j: (b, 0, 0, 0))
    in_spec = pl.BlockSpec((pl.Squeezed(), C, ts, _LANES),
                           lambda b, j: (b, 0, j, 0))

    pi, py, pz = pl.pallas_call(
        kernel,
        out_shape=(part_shape, part_shape, part_shape),
        grid_spec=pltpu.PrefetchScalarGridSpec(
            num_scalar_prefetch=0,
            grid=(B, n_chunks),
            in_specs=[in_spec, in_spec],
            out_specs=[part_spec, part_spec, part_spec],
            scratch_shapes=[
                pltpu.VMEM((C, acc_rows, _LANES), jnp.float32),  # sum(x*t)
                pltpu.VMEM((C, acc_rows, _LANES), jnp.float32),  # sum(t*t)
                pltpu.VMEM((C, acc_rows, _LANES), jnp.float32),  # sum(x*x)
            ],
        ),
        compiler_params=pltpu.CompilerParams(
            dimension_semantics=("parallel", "arbitrary"),
            vmem_limit_bytes=48 * 1024 * 1024),
    )(x, t)

    intersect = jnp.sum(pi, axis=(0, 2, 3))   # (C,)
    y_sum = jnp.sum(py, axis=(0, 2, 3))       # (C,)
    z_sum = jnp.sum(pz, axis=(0, 2, 3))       # (C,)
    dice = 1.0 - (2.0 * intersect + _SMOOTH) / (z_sum + y_sum + _SMOOTH)
    return jnp.sum(dice * weight) / n_classes


def _dice_loss_ref(inputs, target, n_classes, weight=None, softmax=False):
    """Pure-JAX reference mirroring the PyTorch module."""
    if softmax:
        inputs = jax.nn.softmax(inputs, axis=1)
    if weight is None:
        weight = [1.0] * n_classes
    loss = 0.0
    for i in range(n_classes):
        s = inputs[:, i].astype(jnp.float32)
        t = target[:, i].astype(jnp.float32)
        intersect = jnp.sum(s * t)
        y_sum = jnp.sum(t * t)
        z_sum = jnp.sum(s * s)
        dice = 1.0 - (2.0 * intersect + _SMOOTH) / (z_sum + y_sum + _SMOOTH)
        loss = loss + dice * weight[i]
    return loss / n_classes


if __name__ == "__main__":
    key = jax.random.PRNGKey(0)

    # --- check 1: B=2, C=4, 16x16, fused softmax, uniform weights ---
    B, C, H, W = 2, 4, 16, 16
    k1, k2, k3, k4 = jax.random.split(key, 4)
    logits = jax.random.normal(k1, (B, C, H, W), jnp.float32)
    labels = jax.random.randint(k2, (B, H, W), 0, C)
    target = jnp.transpose(
        jax.nn.one_hot(labels, C, dtype=jnp.float32), (0, 3, 1, 2))

    loss = dice_loss(logits, target, n_classes=C, softmax=True)
    loss = jax.block_until_ready(loss)
    ref = _dice_loss_ref(logits, target, n_classes=C, softmax=True)
    assert jnp.allclose(loss, ref, rtol=1e-5, atol=1e-6), (loss, ref)

    # --- check 2: non-128-multiple spatial size (exercises the in-kernel
    #     tail mask under the fused softmax) + explicit class weights ---
    B2, C2, H2, W2 = 2, 3, 10, 10
    logits2 = jax.random.normal(k3, (B2, C2, H2, W2), jnp.float32)
    labels2 = jax.random.randint(k4, (B2, H2, W2), 0, C2)
    target2 = jnp.transpose(
        jax.nn.one_hot(labels2, C2, dtype=jnp.float32), (0, 3, 1, 2))
    w2 = [0.2, 0.3, 0.5]

    loss2 = dice_loss(logits2, target2, n_classes=C2, weight=w2, softmax=True)
    loss2 = jax.block_until_ready(loss2)
    ref2 = _dice_loss_ref(logits2, target2, n_classes=C2, weight=w2,
                          softmax=True)
    assert jnp.allclose(loss2, ref2, rtol=1e-5, atol=1e-6), (loss2, ref2)

    # --- check 3: non-softmax path (scores already normalised) ---
    probs = jax.nn.softmax(logits, axis=1)
    loss3 = dice_loss(probs, target, n_classes=C, softmax=False)
    loss3 = jax.block_until_ready(loss3)
    ref3 = _dice_loss_ref(probs, target, n_classes=C, softmax=False)
    assert jnp.allclose(loss3, ref3, rtol=1e-5, atol=1e-6), (loss3, ref3)

    print("KERNEL_OK")
</pallas_src>

<mosaic_0001>
module attributes {stable_mosaic.version = 11 : i64} {
  func.func @_dice_partial_kernel(%arg0: i32, %arg1: i32, %arg2: memref<1x4x2x128xf32, #tpu.memory_space<vmem>>, %arg3: memref<1x4x2x128xf32, #tpu.memory_space<vmem>>, %arg4: memref<1x4x2x128xf32, #tpu.memory_space<vmem>>, %arg5: memref<1x4x2x128xf32, #tpu.memory_space<vmem>>, %arg6: memref<1x4x2x128xf32, #tpu.memory_space<vmem>>, %arg7: memref<4x2x128xf32, #tpu.memory_space<vmem>>, %arg8: memref<4x2x128xf32, #tpu.memory_space<vmem>>, %arg9: memref<4x2x128xf32, #tpu.memory_space<vmem>>) attributes {dimension_semantics = [#tpu.dimension_semantics<parallel>, #tpu.dimension_semantics<arbitrary>], iteration_bounds = array<i64: 2, 1>, scalar_prefetch = 0 : i64, scratch_operands = 3 : i64, tpu.core_type = #tpu.core_type<tc>, window_params = [{transform_indices = @transform_0, window_bounds = array<i64: 1, 4, 2, 128>}, {transform_indices = @transform_1, window_bounds = array<i64: 1, 4, 2, 128>}, {transform_indices = @transform_2, window_bounds = array<i64: 1, 4, 2, 128>}, {transform_indices = @transform_3, window_bounds = array<i64: 1, 4, 2, 128>}, {transform_indices = @transform_4, window_bounds = array<i64: 1, 4, 2, 128>}]} {
    %c0_i32 = arith.constant 0 : i32
    %0 = arith.cmpi eq, %arg1, %c0_i32 : i32
    %1 = arith.extui %0 : i1 to i32
    %c0_i32_0 = arith.constant 0 : i32
    %2 = arith.cmpi ne, %1, %c0_i32_0 : i32
    scf.if %2 {
      %cst_30 = arith.constant 0.000000e+00 : f32
      %33 = vector.broadcast %cst_30 : f32 to vector<4x2x128xf32>
      %c0_31 = arith.constant 0 : index
      %c0_32 = arith.constant 0 : index
      %c0_33 = arith.constant 0 : index
      %34 = vector.load %arg7[%c0_31, %c0_32, %c0_33] : memref<4x2x128xf32, #tpu.memory_space<vmem>>, vector<4x2x128xf32>
      tpu.vector_store %arg7[%c0_31, %c0_32, %c0_33], %33 {strides = array<i32>} : memref<4x2x128xf32, #tpu.memory_space<vmem>>, vector<4x2x128xf32>,
      %cst_34 = arith.constant 0.000000e+00 : f32
      %35 = vector.broadcast %cst_34 : f32 to vector<4x2x128xf32>
      %c0_35 = arith.constant 0 : index
      %c0_36 = arith.constant 0 : index
      %c0_37 = arith.constant 0 : index
      %36 = vector.load %arg8[%c0_35, %c0_36, %c0_37] : memref<4x2x128xf32, #tpu.memory_space<vmem>>, vector<4x2x128xf32>
      tpu.vector_store %arg8[%c0_35, %c0_36, %c0_37], %35 {strides = array<i32>} : memref<4x2x128xf32, #tpu.memory_space<vmem>>, vector<4x2x128xf32>,
      %cst_38 = arith.constant 0.000000e+00 : f32
      %37 = vector.broadcast %cst_38 : f32 to vector<4x2x128xf32>
      %c0_39 = arith.constant 0 : index
      %c0_40 = arith.constant 0 : index
      %c0_41 = arith.constant 0 : index
      %38 = vector.load %arg9[%c0_39, %c0_40, %c0_41] : memref<4x2x128xf32, #tpu.memory_space<vmem>>, vector<4x2x128xf32>
      tpu.vector_store %arg9[%c0_39, %c0_40, %c0_41], %37 {strides = array<i32>} : memref<4x2x128xf32, #tpu.memory_space<vmem>>, vector<4x2x128xf32>,
    } else {
    }
    %c0 = arith.constant 0 : index
    %c0_1 = arith.constant 0 : index
    %c0_2 = arith.constant 0 : index
    %c0_3 = arith.constant 0 : index
    %3 = vector.load %arg2[%c0, %c0_1, %c0_2, %c0_3] : memref<1x4x2x128xf32, #tpu.memory_space<vmem>>, vector<1x4x2x128xf32>
    %4 = vector.shape_cast %3 : vector<1x4x2x128xf32> to vector<4x2x128xf32>
    %c0_4 = arith.constant 0 : index
    %c0_5 = arith.constant 0 : index
    %c0_6 = arith.constant 0 : index
    %c0_7 = arith.constant 0 : index
    %5 = vector.load %arg3[%c0_4, %c0_5, %c0_6, %c0_7] : memref<1x4x2x128xf32, #tpu.memory_space<vmem>>, vector<1x4x2x128xf32>
    %6 = vector.shape_cast %5 : vector<1x4x2x128xf32> to vector<4x2x128xf32>
    %cst = arith.constant dense<0xFF800000> : vector<2x128xf32>
    %7 = vector.multi_reduction <maximumf>, %4, %cst [0] : vector<4x2x128xf32> to vector<2x128xf32>
    %8 = vector.shape_cast %7 : vector<2x128xf32> to vector<1x2x128xf32>
    %9 = vector.broadcast %8 : vector<1x2x128xf32> to vector<4x2x128xf32>
    %10 = arith.subf %4, %9 : vector<4x2x128xf32>
    %11 = math.exp %10 : vector<4x2x128xf32>
    %cst_8 = arith.constant dense<0.000000e+00> : vector<2x128xf32>
    %12 = vector.multi_reduction <add>, %11, %cst_8 [0] : vector<4x2x128xf32> to vector<2x128xf32>
    %13 = vector.shape_cast %12 : vector<2x128xf32> to vector<1x2x128xf32>
    %cst_9 = arith.constant 1.000000e+00 : f32
    %14 = vector.broadcast %cst_9 : f32 to vector<1x2x128xf32>
    %15 = arith.divf %14, %13 : vector<1x2x128xf32>
    %16 = vector.broadcast %15 : vector<1x2x128xf32> to vector<4x2x128xf32>
    %17 = arith.mulf %11, %16 : vector<4x2x128xf32>
    %c0_10 = arith.constant 0 : index
    %c0_11 = arith.constant 0 : index
    %c0_12 = arith.constant 0 : index
    %18 = vector.load %arg7[%c0_10, %c0_11, %c0_12] : memref<4x2x128xf32, #tpu.memory_space<vmem>>, vector<4x2x128xf32>
    %19 = arith.mulf %17, %6 : vector<4x2x128xf32>
    %20 = arith.addf %18, %19 : vector<4x2x128xf32>
    %c0_13 = arith.constant 0 : index
    %c0_14 = arith.constant 0 : index
    %c0_15 = arith.constant 0 : index
    %21 = vector.load %arg7[%c0_13, %c0_14, %c0_15] : memref<4x2x128xf32, #tpu.memory_space<vmem>>, vector<4x2x128xf32>
    tpu.vector_store %arg7[%c0_13, %c0_14, %c0_15], %20 {strides = array<i32>} : memref<4x2x128xf32, #tpu.memory_space<vmem>>, vector<4x2x128xf32>,
    %c0_16 = arith.constant 0 : index
    %c0_17 = arith.constant 0 : index
    %c0_18 = arith.constant 0 : index
    %22 = vector.load %arg8[%c0_16, %c0_17, %c0_18] : memref<4x2x128xf32, #tpu.memory_space<vmem>>, vector<4x2x128xf32>
    %23 = arith.mulf %6, %6 : vector<4x2x128xf32>
    %24 = arith.addf %22, %23 : vector<4x2x128xf32>
    %c0_19 = arith.constant 0 : index
    %c0_20 = arith.constant 0 : index
    %c0_21 = arith.constant 0 : index
    %25 = vector.load %arg8[%c0_19, %c0_20, %c0_21] : memref<4x2x128xf32, #tpu.memory_space<vmem>>, vector<4x2x128xf32>
    tpu.vector_store %arg8[%c0_19, %c0_20, %c0_21], %24 {strides = array<i32>} : memref<4x2x128xf32, #tpu.memory_space<vmem>>, vector<4x2x128xf32>,
    %c0_22 = arith.constant 0 : index
    %c0_23 = arith.constant 0 : index
    %c0_24 = arith.constant 0 : index
    %26 = vector.load %arg9[%c0_22, %c0_23, %c0_24] : memref<4x2x128xf32, #tpu.memory_space<vmem>>, vector<4x2x128xf32>
    %27 = arith.mulf %17, %17 : vector<4x2x128xf32>
    %28 = arith.addf %26, %27 : vector<4x2x128xf32>
    %c0_25 = arith.constant 0 : index
    %c0_26 = arith.constant 0 : index
    %c0_27 = arith.constant 0 : index
    %29 = vector.load %arg9[%c0_25, %c0_26, %c0_27] : memref<4x2x128xf32, #tpu.memory_space<vmem>>, vector<4x2x128xf32>
    tpu.vector_store %arg9[%c0_25, %c0_26, %c0_27], %28 {strides = array<i32>} : memref<4x2x128xf32, #tpu.memory_space<vmem>>, vector<4x2x128xf32>,
    %c0_i32_28 = arith.constant 0 : i32
    %30 = arith.cmpi eq, %arg1, %c0_i32_28 : i32
    %31 = arith.extui %30 : i1 to i32
    %c0_i32_29 = arith.constant 0 : i32
    %32 = arith.cmpi ne, %31, %c0_i32_29 : i32
    scf.if %32 {
      %c0_30 = arith.constant 0 : index
      %c0_31 = arith.constant 0 : index
      %c0_32 = arith.constant 0 : index
      %33 = vector.load %arg7[%c0_30, %c0_31, %c0_32] : memref<4x2x128xf32, #tpu.memory_space<vmem>>, vector<4x2x128xf32>
      %c0_33 = arith.constant 0 : index
      %c0_34 = arith.constant 0 : index
      %c0_35 = arith.constant 0 : index
      %c0_36 = arith.constant 0 : index
      %34 = vector.load %arg4[%c0_33, %c0_34, %c0_35, %c0_36] : memref<1x4x2x128xf32, #tpu.memory_space<vmem>>, vector<1x4x2x128xf32>
      %35 = vector.shape_cast %34 : vector<1x4x2x128xf32> to vector<4x2x128xf32>
      %36 = vector.shape_cast %33 : vector<4x2x128xf32> to vector<1x4x2x128xf32>
      tpu.vector_store %arg4[%c0_33, %c0_34, %c0_35, %c0_36], %36 {strides = array<i32>} : memref<1x4x2x128xf32, #tpu.memory_space<vmem>>, vector<1x4x2x128xf32>,
      %c0_37 = arith.constant 0 : index
      %c0_38 = arith.constant 0 : index
      %c0_39 = arith.constant 0 : index
      %37 = vector.load %arg8[%c0_37, %c0_38, %c0_39] : memref<4x2x128xf32, #tpu.memory_space<vmem>>, vector<4x2x128xf32>
      %c0_40 = arith.constant 0 : index
      %c0_41 = arith.constant 0 : index
      %c0_42 = arith.constant 0 : index
      %c0_43 = arith.constant 0 : index
      %38 = vector.load %arg5[%c0_40, %c0_41, %c0_42, %c0_43] : memref<1x4x2x128xf32, #tpu.memory_space<vmem>>, vector<1x4x2x128xf32>
      %39 = vector.shape_cast %38 : vector<1x4x2x128xf32> to vector<4x2x128xf32>
      %40 = vector.shape_cast %37 : vector<4x2x128xf32> to vector<1x4x2x128xf32>
      tpu.vector_store %arg5[%c0_40, %c0_41, %c0_42, %c0_43], %40 {strides = array<i32>} : memref<1x4x2x128xf32, #tpu.memory_space<vmem>>, vector<1x4x2x128xf32>,
      %c0_44 = arith.constant 0 : index
      %c0_45 = arith.constant 0 : index
      %c0_46 = arith.constant 0 : index
      %41 = vector.load %arg9[%c0_44, %c0_45, %c0_46] : memref<4x2x128xf32, #tpu.memory_space<vmem>>, vector<4x2x128xf32>
      %c0_47 = arith.constant 0 : index
      %c0_48 = arith.constant 0 : index
      %c0_49 = arith.constant 0 : index
      %c0_50 = arith.constant 0 : index
      %42 = vector.load %arg6[%c0_47, %c0_48, %c0_49, %c0_50] : memref<1x4x2x128xf32, #tpu.memory_space<vmem>>, vector<1x4x2x128xf32>
      %43 = vector.shape_cast %42 : vector<1x4x2x128xf32> to vector<4x2x128xf32>
      %44 = vector.shape_cast %41 : vector<4x2x128xf32> to vector<1x4x2x128xf32>
      tpu.vector_store %arg6[%c0_47, %c0_48, %c0_49, %c0_50], %44 {strides = array<i32>} : memref<1x4x2x128xf32, #tpu.memory_space<vmem>>, vector<1x4x2x128xf32>,
    } else {
    }
    return
  }
  func.func @transform_0(%arg0: i32, %arg1: i32) -> (i32, i32, i32, i32) {
    %c0_i32 = arith.constant 0 : i32
    %c0_i32_0 = arith.constant 0 : i32
    %c0_i32_1 = arith.constant 0 : i32
    return %arg0, %c0_i32, %arg1, %c0_i32_0 : i32, i32, i32, i32
  }
  func.func @transform_1(%arg0: i32, %arg1: i32) -> (i32, i32, i32, i32) {
    %c0_i32 = arith.constant 0 : i32
    %c0_i32_0 = arith.constant 0 : i32
    %c0_i32_1 = arith.constant 0 : i32
    return %arg0, %c0_i32, %arg1, %c0_i32_0 : i32, i32, i32, i32
  }
  func.func @transform_2(%arg0: i32, %arg1: i32) -> (i32, i32, i32, i32) {
    %c0_i32 = arith.constant 0 : i32
    %c0_i32_0 = arith.constant 0 : i32
    %c0_i32_1 = arith.constant 0 : i32
    %c0_i32_2 = arith.constant 0 : i32
    return %arg0, %c0_i32, %c0_i32_0, %c0_i32_1 : i32, i32, i32, i32
  }
  func.func @transform_3(%arg0: i32, %arg1: i32) -> (i32, i32, i32, i32) {
    %c0_i32 = arith.constant 0 : i32
    %c0_i32_0 = arith.constant 0 : i32
    %c0_i32_1 = arith.constant 0 : i32
    %c0_i32_2 = arith.constant 0 : i32
    return %arg0, %c0_i32, %c0_i32_0, %c0_i32_1 : i32, i32, i32, i32
  }
  func.func @transform_4(%arg0: i32, %arg1: i32) -> (i32, i32, i32, i32) {
    %c0_i32 = arith.constant 0 : i32
    %c0_i32_0 = arith.constant 0 : i32
    %c0_i32_1 = arith.constant 0 : i32
    %c0_i32_2 = arith.constant 0 : i32
    return %arg0, %c0_i32, %c0_i32_0, %c0_i32_1 : i32, i32, i32, i32
  }
}

</mosaic_0001>

<llo_original>
// kernel: tpu_custom_call.1
$region0: #{tpu_custom_call.1}
  #allocation0 [shape = 'u32[]', space=smem, size = 0x4, offset = 0x4, fixed_abs, tag = 'smem constant byte address 0x4 - core index']
  #allocation1 [shape = 'u32[144,128]{1,0:T(1,128)}', space=vmem, size = 0x12000, scoped, tag = 'internal scratch']
  #allocation2 [shape = 'f32[4,2,128]{2,1,0:T(2,128)}', space=vmem, size = 0x1000, scoped, tag = 'scratch operand']
  #allocation3 [shape = 'f32[4,2,128]{2,1,0:T(2,128)}', space=vmem, size = 0x1000, scoped, tag = 'scratch operand']
  #allocation4 [shape = 'f32[4,2,128]{2,1,0:T(2,128)}', space=vmem, size = 0x1000, scoped, tag = 'scratch operand']
  %s0 = inlined_call_operand.hbm [shape: f32[2,4,2,128], index: 0, kind: input, shape index: {}]
  %s1 = inlined_call_operand.hbm [shape: f32[2,4,2,128], index: 1, kind: input, shape index: {}]
  %s2 = inlined_call_operand.hbm [shape: f32[2,4,2,128], index: 2, kind: output, shape index: {0}]
  %s3 = inlined_call_operand.hbm [shape: f32[2,4,2,128], index: 3, kind: output, shape index: {1}]
  %s4 = inlined_call_operand.hbm [shape: f32[2,4,2,128], index: 4, kind: output, shape index: {2}]
  %5 = xla_tuple %s2, %s3, %s4
  %s6 = sld [smem:[#allocation0]]
  $region73: #{tpu_custom_call.1} parent=0
    _
  %s8 = ssub.s32 1, %s6
  %s9 = scalar_select 0, %s8, %s6
  $region1: #{tpu_custom_call.1} parent=0
    #allocation5 [shape = 'u8[8192]{0}', space=vmem, size = 0x2000, scoped, tag = 'input window, operand 0']
    #allocation6 [shape = 's32[2]{0}', space=sflag, size = 0x8, scoped, tag = 'scoped memory for tpu_custom_call.1']
    #allocation7 [shape = 's32[2]{0}', space=sflag, size = 0x8, scoped, tag = 'scoped memory for tpu_custom_call.1']
    #allocation8 [shape = 'u8[8192]{0}', space=vmem, size = 0x2000, scoped, tag = 'input window, operand 1']
    #allocation9 [shape = 's32[2]{0}', space=sflag, size = 0x8, scoped, tag = 'scoped memory for tpu_custom_call.1']
    #allocation10 [shape = 'u8[8192]{0}', space=vmem, size = 0x2000, scoped, tag = 'output window, operand 0']
    #allocation11 [shape = 'u8[8192]{0}', space=vmem, size = 0x2000, scoped, tag = 'output window, operand 1']
    #allocation12 [shape = 's32[2]{0}', space=sflag, size = 0x8, scoped, tag = 'scoped memory for tpu_custom_call.1']
    #allocation13 [shape = 'u8[8192]{0}', space=vmem, size = 0x2000, scoped, tag = 'output window, operand 2']
    %10 = vsyncpa [#allocation6], 0
    %s11 = scalar_lea.sflag [#allocation6], 1
    %12 = vsyncpa %s11, 0
    %13 = vsyncpa [#allocation9], 0
    %s14 = scalar_lea.sflag [#allocation9], 1
    %15 = vsyncpa %s14, 0
    %16 = vsyncpa [#allocation7], 0
    %s17 = scalar_lea.sflag [#allocation7], 1
    %18 = vsyncpa %s17, 0
    %19 = vsyncpa [#allocation12], 0
    %s20 = scalar_lea.sflag [#allocation12], 1
    %21 = vsyncpa %s20, 0
    loop: start=0, step=1, limit=4
    $region2: #{tpu_custom_call.1} parent=1 // loop_pre_header
      _
    $region3: #{tpu_custom_call.1} parent=1 // loop_header
      %s23 = sphi 0, %s27
      %p24 = scmp.ge.s32.totalorder %s23, 4
      %s30 = sphi 0, %s42
      %s31 = sphi 0, %s38
      %s32 = sphi 0, %s30
      %s33 = sphi 0, %s31
      %s34 = sphi 0, %s32
      %s35 = sphi 0, %s33
      %s47 = sphi 0, %s49
      %s50 = sphi 0, %s47
      %s51 = sphi 0, %s50
      %s67 = sphi 0, %s51
      %s75 = sphi 0, %s77
      %s78 = sphi 0, %s75
      %s79 = sphi 0, %s78
      %s95 = sphi 0, %s79
      %s101 = sphi 0, %s103
      %s104 = sphi 0, %s101
      %s105 = sphi 0, %s104
      %s121 = sphi 0, %s105
      %s127 = sphi 0, %s129
      %s130 = sphi 0, %s127
      %s131 = sphi 0, %s130
      %s147 = sphi 0, %s131
      %s153 = sphi 0, %s155
      %s156 = sphi 0, %s153
      %s157 = sphi 0, %s156
      %s173 = sphi 0, %s157
    $region4: #{tpu_custom_call.1} parent=1 // loop_header_branch
      %26 = sbr.rel (%p24) target = $region8
    $region5: #{tpu_custom_call.1} parent=1 // loop_body
      %s28 = ssub.s32 %s23, 1
      %s29 = ssub.s32 %s23, 2
      %s36 = sadd.s32 1, %s31
      %p37 = scmp.ge.s32.totalorder %s36, 1
      %s38 = scalar_select %p37, 0, %s36
      %s39 = sadd.s32 1, %s30
      %s40 = scalar_select %p37, %s39, %s30
      %p41 = scmp.ge.s32.totalorder %s40, 2
      %s42 = scalar_select %p41, 0, %s40
      %s43 = ssub.s32 %s30, %s42
      %s44 = ssub.s32 %s31, %s38
      %s45 = sor.u32 %s43, %s44
      %p46 = scmp.eq.s32.totalorder %s45, 0
      %s48 = sadd.s32 %s47, 1
      %s49 = scalar_select %p46, %s47, %s48
      %p52 = pneg %p46
      %p53 = scmp.eq.s32.totalorder %s23, 1
      %p54 = por %p52, %p53
      %p55 = scmp.ne.s32.totalorder %s47, %s50
      %p56 = scmp.eq.s32.totalorder %s23, 0
      %p57 = por %p55, %p56
      %p58 = scmp.ne.s32.totalorder %s47, %s50
      %p59 = scmp.eq.s32.totalorder %s28, 1
      %p60 = por %p58, %p59
      %p61 = scmp.ne.s32.totalorder %s50, %s51
      %p62 = scmp.eq.s32.totalorder %s28, 0
      %p63 = por %p61, %p62
      %p64 = scmp.ne.s32.totalorder %s50, %s51
      %p65 = scmp.eq.s32.totalorder %s29, 1
      %p66 = por %p64, %p65
      %p68 = scmp.ne.s32.totalorder %s51, %s67
      %p69 = scmp.eq.s32.totalorder %s29, 0
      %p70 = por %p68, %p69
      %s71 = ssub.s32 %s30, %s42
      %s72 = ssub.s32 %s31, %s38
      %s73 = sor.u32 %s71, %s72
      %p74 = scmp.eq.s32.totalorder %s73, 0
      %s76 = sadd.s32 %s75, 1
      %s77 = scalar_select %p74, %s75, %s76
      %p80 = pneg %p74
      %p81 = scmp.eq.s32.totalorder %s23, 1
      %p82 = por %p80, %p81
      %p83 = scmp.ne.s32.totalorder %s75, %s78
      %p84 = scmp.eq.s32.totalorder %s23, 0
      %p85 = por %p83, %p84
      %p86 = scmp.ne.s32.totalorder %s75, %s78
      %p87 = scmp.eq.s32.totalorder %s28, 1
      %p88 = por %p86, %p87
      %p89 = scmp.ne.s32.totalorder %s78, %s79
      %p90 = scmp.eq.s32.totalorder %s28, 0
      %p91 = por %p89, %p90
      %p92 = scmp.ne.s32.totalorder %s78, %s79
      %p93 = scmp.eq.s32.totalorder %s29, 1
      %p94 = por %p92, %p93
      %p96 = scmp.ne.s32.totalorder %s79, %s95
      %p97 = scmp.eq.s32.totalorder %s29, 0
      %p98 = por %p96, %p97
      %s99 = ssub.s32 %s30, %s42
      %p100 = scmp.eq.s32.totalorder %s99, 0
      %s102 = sadd.s32 %s101, 1
      %s103 = scalar_select %p100, %s101, %s102
      %p106 = pneg %p100
      %p107 = scmp.eq.s32.totalorder %s23, 1
      %p108 = por %p106, %p107
      %p109 = scmp.ne.s32.totalorder %s101, %s104
      %p110 = scmp.eq.s32.totalorder %s23, 0
      %p111 = por %p109, %p110
      %p112 = scmp.ne.s32.totalorder %s101, %s104
      %p113 = scmp.eq.s32.totalorder %s28, 1
      %p114 = por %p112, %p113
      %p115 = scmp.ne.s32.totalorder %s104, %s105
      %p116 = scmp.eq.s32.totalorder %s28, 0
      %p117 = por %p115, %p116
      %p118 = scmp.ne.s32.totalorder %s104, %s105
      %p119 = scmp.eq.s32.totalorder %s29, 1
      %p120 = por %p118, %p119
      %p122 = scmp.ne.s32.totalorder %s105, %s121
      %p123 = scmp.eq.s32.totalorder %s29, 0
      %p124 = por %p122, %p123
      %s125 = ssub.s32 %s30, %s42
      %p126 = scmp.eq.s32.totalorder %s125, 0
      %s128 = sadd.s32 %s127, 1
      %s129 = scalar_select %p126, %s127, %s128
      %p132 = pneg %p126
      %p133 = scmp.eq.s32.totalorder %s23, 1
      %p134 = por %p132, %p133
      %p135 = scmp.ne.s32.totalorder %s127, %s130
      %p136 = scmp.eq.s32.totalorder %s23, 0
      %p137 = por %p135, %p136
      %p138 = scmp.ne.s32.totalorder %s127, %s130
      %p139 = scmp.eq.s32.totalorder %s28, 1
      %p140 = por %p138, %p139
      %p141 = scmp.ne.s32.totalorder %s130, %s131
      %p142 = scmp.eq.s32.totalorder %s28, 0
      %p143 = por %p141, %p142
      %p144 = scmp.ne.s32.totalorder %s130, %s131
      %p145 = scmp.eq.s32.totalorder %s29, 1
      %p146 = por %p144, %p145
      %p148 = scmp.ne.s32.totalorder %s131, %s147
      %p149 = scmp.eq.s32.totalorder %s29, 0
      %p150 = por %p148, %p149
      %s151 = ssub.s32 %s30, %s42
      %p152 = scmp.eq.s32.totalorder %s151, 0
      %s154 = sadd.s32 %s153, 1
      %s155 = scalar_select %p152, %s153, %s154
      %p158 = pneg %p152
      %p159 = scmp.eq.s32.totalorder %s23, 1
      %p160 = por %p158, %p159
      %p161 = scmp.ne.s32.totalorder %s153, %s156
      %p162 = scmp.eq.s32.totalorder %s23, 0
      %p163 = por %p161, %p162
      %p164 = scmp.ne.s32.totalorder %s153, %s156
      %p165 = scmp.eq.s32.totalorder %s28, 1
      %p166 = por %p164, %p165
      %p167 = scmp.ne.s32.totalorder %s156, %s157
      %p168 = scmp.eq.s32.totalorder %s28, 0
      %p169 = por %p167, %p168
      %p170 = scmp.ne.s32.totalorder %s156, %s157
      %p171 = scmp.eq.s32.totalorder %s29, 1
      %p172 = por %p170, %p171
      %p174 = scmp.ne.s32.totalorder %s157, %s173
      %p175 = scmp.eq.s32.totalorder %s29, 0
      %p176 = por %p174, %p175
      %p177 = scmp.le.s32.totalorder 1, %s23
      %p178 = scmp.lt.s32.totalorder %s23, 3
      %p179 = pnand %p177, %p178
      %p180 = pneg %p179
      // Predicated region
      $region9: #{tpu_custom_call.1} parent=5 // pred_check
        _
      $region10: #{tpu_custom_call.1} parent=5 // pred_check_branch
        %182 = sbr.rel (%p179) target = $region12
      $region11: #{tpu_custom_call.1} parent=5 // pred_region
        %s183 = ssub.s32 %s23, 1
      $region12: #{tpu_custom_call.1} parent=5 // pred_fallthru
        _
      %p184 = scmp.lt.s32.totalorder %s23, 2
      // Predicated region
      $region13: #{tpu_custom_call.1} parent=5 // pred_check
        %p185 = pneg %p184
      $region14: #{tpu_custom_call.1} parent=5 // pred_check_branch
        %187 = sbr.rel (%p185) target = $region16
      $region15: #{tpu_custom_call.1} parent=5 // pred_region
        // Predicated region
        $region17: #{tpu_custom_call.1} parent=15 // pred_check
          %p188 = pneg %p57
        $region18: #{tpu_custom_call.1} parent=15 // pred_check_branch
          %190 = sbr.rel (%p188) target = $region20
        $region19: #{tpu_custom_call.1} parent=15 // pred_region
          %s191 = sand.u32 %s47, 1
          %s192 = scalar_lea.sflag [#allocation6], %s191
          %s193 = sand.u32 %s47, 1
          %s194 = smul.addr %s193, 8
          %s195 = scalar_lea.vmem [#allocation5], %s194
          %s197 = ssub.s32 128, 128
          %198 = vsyncadd %s192, %s197
          %s199 = smul.addr %s30, 4
          %s200 = sadd.s32 %s31, %s199
          %s201 = smul.addr %s200, 32
          %s202 = scalar_lea.hbm %s0, %s201
          %s203 = sshll.u32 %s195, 4
          %s204 = int_to_ptr.vmem [resolvable:$true] %s203
          %209 = dma.hbm_to_vmem [thread:$0]  %s202, 128, %s204, %s192, 32, 32, 2
        $region20: #{tpu_custom_call.1} parent=15 // pred_fallthru
          _
        // Predicated region
        $region21: #{tpu_custom_call.1} parent=15 // pred_check
          %p210 = pneg %p85
        $region22: #{tpu_custom_call.1} parent=15 // pred_check_branch
          %212 = sbr.rel (%p210) target = $region24
        $region23: #{tpu_custom_call.1} parent=15 // pred_region
          %s213 = sand.u32 %s75, 1
          %s214 = scalar_lea.sflag [#allocation9], %s213
          %s215 = sand.u32 %s75, 1
          %s216 = smul.addr %s215, 8
          %s217 = scalar_lea.vmem [#allocation8], %s216
          %s219 = ssub.s32 128, 128
          %220 = vsyncadd %s214, %s219
          %s221 = smul.addr %s30, 4
          %s222 = sadd.s32 %s31, %s221
          %s223 = smul.addr %s222, 32
          %s224 = scalar_lea.hbm %s1, %s223
          %s225 = sshll.u32 %s217, 4
          %s226 = int_to_ptr.vmem [resolvable:$true] %s225
          %231 = dma.hbm_to_vmem [thread:$0]  %s224, 128, %s226, %s214, 32, 32, 2
        $region24: #{tpu_custom_call.1} parent=15 // pred_fallthru
          _
      $region16: #{tpu_custom_call.1} parent=5 // pred_fallthru
        _
      %p232 = scmp.le.s32.totalorder 1, %s23
      %p233 = scmp.lt.s32.totalorder %s23, 3
      %p234 = pnand %p232, %p233
      %p235 = pneg %p234
      // Predicated region
      $region25: #{tpu_custom_call.1} parent=5 // pred_check
        _
      $region26: #{tpu_custom_call.1} parent=5 // pred_check_branch
        %237 = sbr.rel (%p234) target = $region28
      $region27: #{tpu_custom_call.1} parent=5 // pred_region
        %s238 = ssub.s32 %s23, 1
        %s239 = sand.u32 %s50, 1
        %s240 = scalar_lea.sflag [#allocation6], %s239
        %s241 = sand.u32 %s50, 1
        %s242 = smul.addr %s241, 8
        %s243 = scalar_lea.vmem [#allocation5], %s242
        // Predicated region
        $region29: #{tpu_custom_call.1} parent=27 // pred_check
          %p244 = pneg %p63
        $region30: #{tpu_custom_call.1} parent=27 // pred_check_branch
          %246 = sbr.rel (%p244) target = $region32
        $region31: #{tpu_custom_call.1} parent=27 // pred_region
          %247 = dma.done %s240, 128
        $region32: #{tpu_custom_call.1} parent=27 // pred_fallthru
          _
        %s248 = sand.u32 %s78, 1
        %s249 = scalar_lea.sflag [#allocation9], %s248
        %s250 = sand.u32 %s78, 1
        %s251 = smul.addr %s250, 8
        %s252 = scalar_lea.vmem [#allocation8], %s251
        // Predicated region
        $region33: #{tpu_custom_call.1} parent=27 // pred_check
          %p253 = pneg %p91
        $region34: #{tpu_custom_call.1} parent=27 // pred_check_branch
          %255 = sbr.rel (%p253) target = $region36
        $region35: #{tpu_custom_call.1} parent=27 // pred_region
          %256 = dma.done %s249, 128
        $region36: #{tpu_custom_call.1} parent=27 // pred_fallthru
          _
        %s257 = sand.u32 %s50, 1
        %s258 = scalar_lea.sflag [#allocation6], %s257
        %s259 = sand.u32 %s50, 1
        %s260 = smul.addr %s259, 8
        %s261 = scalar_lea.vmem [#allocation5], %s260
        %p262 = pneg %p63
        %p263 = pneg %p60
        %s264 = sand.u32 %s78, 1
        %s265 = scalar_lea.sflag [#allocation9], %s264
        %s266 = sand.u32 %s78, 1
        %s267 = smul.addr %s266, 8
        %s268 = scalar_lea.vmem [#allocation8], %s267
        %p269 = pneg %p91
        %p270 = pneg %p88
        %p271 = pneg %p117
        %p272 = pneg %p114
        %s273 = sand.u32 %s104, 1
        %s274 = scalar_lea.sflag [#allocation7], %s273
        %s275 = sand.u32 %s104, 1
        %s276 = smul.addr %s275, 8
        %s277 = scalar_lea.vmem [#allocation10], %s276
        %p278 = pneg %p143
        %p279 = pneg %p140
        %s280 = sand.u32 %s28, 1
        %s281 = scalar_lea.sflag [#allocation12], %s280
        %s282 = sand.u32 %s130, 1
        %s283 = smul.addr %s282, 8
        %s284 = scalar_lea.vmem [#allocation11], %s283
        %p285 = pneg %p169
        %p286 = pneg %p166
        %s287 = sand.u32 %s28, 1
        %s288 = scalar_lea.sflag [#allocation12], %s287
        %s289 = sand.u32 %s156, 1
        %s290 = smul.addr %s289, 8
        %s291 = scalar_lea.vmem [#allocation13], %s290
        %p292 = scmp.eq.s32.totalorder %s33, 0
        // Predicated region
        $region37: #{tpu_custom_call.1} parent=27 // pred_check
          %p293 = pneg %p292
        $region38: #{tpu_custom_call.1} parent=27 // pred_check_branch
          %295 = sbr.rel (%p293) target = $region40
        $region39: #{tpu_custom_call.1} parent=27 // pred_region
          %296 = vst [vmem:[#allocation2] sm:$0x3] 0.0
          %297 = vst [vmem:[#allocation2 + $0x2] sm:$0x3] 0.0
          %298 = vst [vmem:[#allocation2 + $0x4] sm:$0x3] 0.0
          %299 = vst [vmem:[#allocation2 + $0x6] sm:$0x3] 0.0
          %300 = vst [vmem:[#allocation3] sm:$0x3] 0.0
          %301 = vst [vmem:[#allocation3 + $0x2] sm:$0x3] 0.0
          %302 = vst [vmem:[#allocation3 + $0x4] sm:$0x3] 0.0
          %303 = vst [vmem:[#allocation3 + $0x6] sm:$0x3] 0.0
          %304 = vst [vmem:[#allocation4] sm:$0x3] 0.0
          %305 = vst [vmem:[#allocation4 + $0x2] sm:$0x3] 0.0
          %306 = vst [vmem:[#allocation4 + $0x4] sm:$0x3] 0.0
          %307 = vst [vmem:[#allocation4 + $0x6] sm:$0x3] 0.0
        $region40: #{tpu_custom_call.1} parent=27 // pred_fallthru
          _
        %v308 = vld [vmem:[%s243] sm:$0x3]
        %v309 = vld [vmem:[%s243 + $0x2] sm:$0x3]
        %v310 = vld [vmem:[%s243 + $0x4] sm:$0x3]
        %v311 = vld [vmem:[%s243 + $0x6] sm:$0x3]
        %v312 = vld [vmem:[%s252] sm:$0x3]
        %v313 = vld [vmem:[%s252 + $0x2] sm:$0x3]
        %v314 = vld [vmem:[%s252 + $0x4] sm:$0x3]
        %v315 = vld [vmem:[%s252 + $0x6] sm:$0x3]
        %vm316 = vcmask 1041408
        %v317 = vsel %vm316, %v308, -inf
        %v318 = vsel %vm316, %v309, -inf
        %v319 = vsel %vm316, %v310, -inf
        %v320 = vsel %vm316, %v311, -inf
        %v321 = vmax.f32 %v317, %v318
        %v322 = vmax.f32 %v319, %v320
        %v323 = vmax.f32 %v321, %v322
        %v324 = vsub.f32 %v308, %v323
        %v325 = vsub.f32 %v309, %v323
        %v326 = vsub.f32 %v310, %v323
        %v327 = vsub.f32 %v311, %v323
        %v328 = vmul.f32 %v324, 1.442695
        %v329 = vpow.pop %v328
        %v330 = vmul.f32 %v325, 1.442695
        %v331 = vpow.pop %v330
        %v332 = vmul.f32 %v326, 1.442695
        %v333 = vpow.pop %v332
        %v334 = vmul.f32 %v327, 1.442695
        %v335 = vpow.pop %v334
        %v336 = vsel %vm316, %v329, 0.0
        %v337 = vsel %vm316, %v331, 0.0
        %v338 = vadd.f32 %v336, %v337
        %v339 = vsel %vm316, %v333, 0.0
        %v340 = vadd.f32 %v338, %v339
        %v341 = vsel %vm316, %v335, 0.0
        %v342 = vadd.f32 %v340, %v341
        %v343 = vrcp.pop %v342
        %v344 = vmul.f32 1.0, %v343
        %v345 = vmul.f32 %v329, %v344
        %v346 = vmul.f32 %v331, %v344
        %v347 = vmul.f32 %v333, %v344
        %v348 = vmul.f32 %v335, %v344
        %v349 = vld [vmem:[#allocation2] sm:$0x3]
        %v350 = vld [vmem:[#allocation2 + $0x2] sm:$0x3]
        %v351 = vld [vmem:[#allocation2 + $0x4] sm:$0x3]
        %v352 = vld [vmem:[#allocation2 + $0x6] sm:$0x3]
        %v353 = vmul.f32 %v345, %v312
        %v354 = vmul.f32 %v346, %v313
        %v355 = vmul.f32 %v347, %v314
        %v356 = vmul.f32 %v348, %v315
        %v357 = vadd.f32 %v349, %v353
        %v358 = vadd.f32 %v350, %v354
        %v359 = vadd.f32 %v351, %v355
        %v360 = vadd.f32 %v352, %v356
        %361 = vst [vmem:[#allocation2] sm:$0x3] %v357
        %362 = vst [vmem:[#allocation2 + $0x2] sm:$0x3] %v358
        %363 = vst [vmem:[#allocation2 + $0x4] sm:$0x3] %v359
        %364 = vst [vmem:[#allocation2 + $0x6] sm:$0x3] %v360
        %v365 = vld [vmem:[#allocation3] sm:$0x3]
        %v366 = vld [vmem:[#allocation3 + $0x2] sm:$0x3]
        %v367 = vld [vmem:[#allocation3 + $0x4] sm:$0x3]
        %v368 = vld [vmem:[#allocation3 + $0x6] sm:$0x3]
        %v369 = vmul.f32 %v312, %v312
        %v370 = vmul.f32 %v313, %v313
        %v371 = vmul.f32 %v314, %v314
        %v372 = vmul.f32 %v315, %v315
        %v373 = vadd.f32 %v365, %v369
        %v374 = vadd.f32 %v366, %v370
        %v375 = vadd.f32 %v367, %v371
        %v376 = vadd.f32 %v368, %v372
        %377 = vst [vmem:[#allocation3] sm:$0x3] %v373
        %378 = vst [vmem:[#allocation3 + $0x2] sm:$0x3] %v374
        %379 = vst [vmem:[#allocation3 + $0x4] sm:$0x3] %v375
        %380 = vst [vmem:[#allocation3 + $0x6] sm:$0x3] %v376
        %v381 = vld [vmem:[#allocation4] sm:$0x3]
        %v382 = vld [vmem:[#allocation4 + $0x2] sm:$0x3]
        %v383 = vld [vmem:[#allocation4 + $0x4] sm:$0x3]
        %v384 = vld [vmem:[#allocation4 + $0x6] sm:$0x3]
        %v385 = vmul.f32 %v345, %v345
        %v386 = vmul.f32 %v346, %v346
        %v387 = vmul.f32 %v347, %v347
        %v388 = vmul.f32 %v348, %v348
        %v389 = vadd.f32 %v381, %v385
        %v390 = vadd.f32 %v382, %v386
        %v391 = vadd.f32 %v383, %v387
        %v392 = vadd.f32 %v384, %v388
        %393 = vst [vmem:[#allocation4] sm:$0x3] %v389
        %394 = vst [vmem:[#allocation4 + $0x2] sm:$0x3] %v390
        %395 = vst [vmem:[#allocation4 + $0x4] sm:$0x3] %v391
        %396 = vst [vmem:[#allocation4 + $0x6] sm:$0x3] %v392
        // Predicated region
        $region41: #{tpu_custom_call.1} parent=27 // pred_check
          %p397 = pneg %p292
        $region42: #{tpu_custom_call.1} parent=27 // pred_check_branch
          %399 = sbr.rel (%p397) target = $region44
        $region43: #{tpu_custom_call.1} parent=27 // pred_region
          %v400 = vld [vmem:[#allocation2] sm:$0x3]
          %v401 = vld [vmem:[#allocation2 + $0x2] sm:$0x3]
          %v402 = vld [vmem:[#allocation2 + $0x4] sm:$0x3]
          %v403 = vld [vmem:[#allocation2 + $0x6] sm:$0x3]
          %404 = vst [vmem:[%s277] sm:$0x3] %v400
          %405 = vst [vmem:[%s277 + $0x2] sm:$0x3] %v401
          %406 = vst [vmem:[%s277 + $0x4] sm:$0x3] %v402
          %407 = vst [vmem:[%s277 + $0x6] sm:$0x3] %v403
          %v408 = vld [vmem:[#allocation3] sm:$0x3]
          %v409 = vld [vmem:[#allocation3 + $0x2] sm:$0x3]
          %v410 = vld [vmem:[#allocation3 + $0x4] sm:$0x3]
          %v411 = vld [vmem:[#allocation3 + $0x6] sm:$0x3]
          %412 = vst [vmem:[%s284] sm:$0x3] %v408
          %413 = vst [vmem:[%s284 + $0x2] sm:$0x3] %v409
          %414 = vst [vmem:[%s284 + $0x4] sm:$0x3] %v410
          %415 = vst [vmem:[%s284 + $0x6] sm:$0x3] %v411
          %v416 = vld [vmem:[#allocation4] sm:$0x3]
          %v417 = vld [vmem:[#allocation4 + $0x2] sm:$0x3]
          %v418 = vld [vmem:[#allocation4 + $0x4] sm:$0x3]
          %v419 = vld [vmem:[#allocation4 + $0x6] sm:$0x3]
          %420 = vst [vmem:[%s291] sm:$0x3] %v416
          %421 = vst [vmem:[%s291 + $0x2] sm:$0x3] %v417
          %422 = vst [vmem:[%s291 + $0x4] sm:$0x3] %v418
          %423 = vst [vmem:[%s291 + $0x6] sm:$0x3] %v419
        $region44: #{tpu_custom_call.1} parent=27 // pred_fallthru
          _
        %s424 = sand.u32 %s104, 1
        %s425 = scalar_lea.sflag [#allocation7], %s424
        %s426 = sand.u32 %s104, 1
        %s427 = smul.addr %s426, 8
        %s428 = scalar_lea.vmem [#allocation10], %s427
        %s429 = sand.u32 %s28, 1
        %s430 = scalar_lea.sflag [#allocation12], %s429
        %s431 = sand.u32 %s130, 1
        %s432 = smul.addr %s431, 8
        %s433 = scalar_lea.vmem [#allocation11], %s432
        %s434 = sand.u32 %s28, 1
        %s435 = scalar_lea.sflag [#allocation12], %s434
        %s436 = sand.u32 %s156, 1
        %s437 = smul.addr %s436, 8
        %s438 = scalar_lea.vmem [#allocation13], %s437
        // Predicated region
        $region45: #{tpu_custom_call.1} parent=27 // pred_check
          %p439 = pneg %p114
        $region46: #{tpu_custom_call.1} parent=27 // pred_check_branch
          %441 = sbr.rel (%p439) target = $region48
        $region47: #{tpu_custom_call.1} parent=27 // pred_region
          %s443 = ssub.s32 128, 128
          %444 = vsyncadd %s425, %s443
          %s445 = smul.addr %s32, 4
          %s446 = smul.addr %s445, 32
          %s447 = scalar_lea.hbm %s2, %s446
          %s448 = sshll.u32 %s428, 4
          %s449 = int_to_ptr.vmem [resolvable:$true] %s448
          %454 = dma.vmem_to_hbm [thread:$0]  %s449, 128, %s447, %s425, 32, 32, 2
        $region48: #{tpu_custom_call.1} parent=27 // pred_fallthru
          _
        // Predicated region
        $region49: #{tpu_custom_call.1} parent=27 // pred_check
          %p455 = pneg %p140
        $region50: #{tpu_custom_call.1} parent=27 // pred_check_branch
          %457 = sbr.rel (%p455) target = $region52
        $region51: #{tpu_custom_call.1} parent=27 // pred_region
          %s459 = ssub.s32 128, 128
          %460 = vsyncadd %s430, %s459
          %s461 = smul.addr %s32, 4
          %s462 = smul.addr %s461, 32
          %s463 = scalar_lea.hbm %s3, %s462
          %s464 = sshll.u32 %s433, 4
          %s465 = int_to_ptr.vmem [resolvable:$true] %s464
          %470 = dma.vmem_to_hbm [thread:$0]  %s465, 128, %s463, %s430, 32, 32, 2
        $region52: #{tpu_custom_call.1} parent=27 // pred_fallthru
          _
        // Predicated region
        $region53: #{tpu_custom_call.1} parent=27 // pred_check
          %p471 = pneg %p166
        $region54: #{tpu_custom_call.1} parent=27 // pred_check_branch
          %473 = sbr.rel (%p471) target = $region56
        $region55: #{tpu_custom_call.1} parent=27 // pred_region
          %s475 = ssub.s32 128, 128
          %476 = vsyncadd %s435, %s475
          %s477 = smul.addr %s32, 4
          %s478 = smul.addr %s477, 32
          %s479 = scalar_lea.hbm %s4, %s478
          %s480 = sshll.u32 %s438, 4
          %s481 = int_to_ptr.vmem [resolvable:$true] %s480
          %486 = dma.vmem_to_hbm [thread:$0]  %s481, 128, %s479, %s435, 32, 32, 2
        $region56: #{tpu_custom_call.1} parent=27 // pred_fallthru
          _
      $region28: #{tpu_custom_call.1} parent=5 // pred_fallthru
        _
      %p487 = scmp.le.s32.totalorder 2, %s23
      // Predicated region
      $region57: #{tpu_custom_call.1} parent=5 // pred_check
        %p488 = pneg %p487
      $region58: #{tpu_custom_call.1} parent=5 // pred_check_branch
        %490 = sbr.rel (%p488) target = $region60
      $region59: #{tpu_custom_call.1} parent=5 // pred_region
        %s491 = ssub.s32 %s23, 2
        // Predicated region
        $region61: #{tpu_custom_call.1} parent=59 // pred_check
          %p492 = pneg %p120
        $region62: #{tpu_custom_call.1} parent=59 // pred_check_branch
          %494 = sbr.rel (%p492) target = $region64
        $region63: #{tpu_custom_call.1} parent=59 // pred_region
          %s495 = sand.u32 %s105, 1
          %s496 = scalar_lea.sflag [#allocation7], %s495
          %s497 = sand.u32 %s105, 1
          %s498 = smul.addr %s497, 8
          %s499 = scalar_lea.vmem [#allocation10], %s498
          %500 = dma.done %s496, 128
        $region64: #{tpu_custom_call.1} parent=59 // pred_fallthru
          _
        // Predicated region
        $region65: #{tpu_custom_call.1} parent=59 // pred_check
          %p501 = pneg %p146
        $region66: #{tpu_custom_call.1} parent=59 // pred_check_branch
          %503 = sbr.rel (%p501) target = $region68
        $region67: #{tpu_custom_call.1} parent=59 // pred_region
          %s504 = sand.u32 %s29, 1
          %s505 = scalar_lea.sflag [#allocation12], %s504
          %s506 = sand.u32 %s131, 1
          %s507 = smul.addr %s506, 8
          %s508 = scalar_lea.vmem [#allocation11], %s507
          %509 = dma.done %s505, 128
        $region68: #{tpu_custom_call.1} parent=59 // pred_fallthru
          _
        // Predicated region
        $region69: #{tpu_custom_call.1} parent=59 // pred_check
          %p510 = pneg %p172
        $region70: #{tpu_custom_call.1} parent=59 // pred_check_branch
          %512 = sbr.rel (%p510) target = $region72
        $region71: #{tpu_custom_call.1} parent=59 // pred_region
          %s513 = sand.u32 %s29, 1
          %s514 = scalar_lea.sflag [#allocation12], %s513
          %s515 = sand.u32 %s157, 1
          %s516 = smul.addr %s515, 8
          %s517 = scalar_lea.vmem [#allocation13], %s516
          %518 = dma.done %s514, 128
        $region72: #{tpu_custom_call.1} parent=59 // pred_fallthru
          _
      $region60: #{tpu_custom_call.1} parent=5 // pred_fallthru
        _
    $region6: #{tpu_custom_call.1} parent=1 // loop_footer
      %s27 = sadd.s32 1, %s23
    $region7: #{tpu_custom_call.1} parent=1 // loop_footer_branch
      %22 = sbr.rel target = $region3
    $region8: #{tpu_custom_call.1} parent=1 // loop_exit
      _
    %519 = vsyncpa [#allocation6], 1
    %s520 = scalar_lea.sflag [#allocation6], 1
    %521 = vsyncpa %s520, 1
    %522 = vsyncpa [#allocation9], 1
    %s523 = scalar_lea.sflag [#allocation9], 1
    %524 = vsyncpa %s523, 1
    %525 = vsyncpa [#allocation7], 1
    %s526 = scalar_lea.sflag [#allocation7], 1
    %527 = vsyncpa %s526, 1
    %528 = vsyncpa [#allocation12], 1
    %s529 = scalar_lea.sflag [#allocation12], 1
    %530 = vsyncpa %s529, 1

</llo_original>
